<compile_context>
chip_gen: v7x
topology: tpu7x:2x2x1
jax: 0.10.0
libtpu: 0.0.40
codegen_flags: <defaults>
</compile_context>

<pallas_src>
import jax
import jax.numpy as jnp
from jax import lax
from jax.experimental import pallas as pl
from jax.experimental.pallas import tpu as pltpu


def _make_kernel(bt: int, n: int):
    """bt = batch elements per grid step, n = W*H spatial positions each."""

    def kernel(x_ref, wqk_ref, rk_ref, wv_ref, gbv_ref, gamma_ref, out_ref):
        # x_ref / out_ref: (C, bt*n) f32, channel-major, batches on the lane axis.
        xb = x_ref[...]                                    # f32 (kept for residual)
        x16 = xb.astype(jnp.bfloat16)                      # bf16 MXU operand

        # Shared (batch-independent) projections at full lane width bt*n.
        z = jnp.dot(wqk_ref[...], x16,
                    preferred_element_type=jnp.float32)    # (C, bt*n)
        r = jnp.dot(rk_ref[...], x16,
                    preferred_element_type=jnp.float32)    # (1, bt*n)
        v = jnp.dot(wv_ref[...], x16,
                    preferred_element_type=jnp.float32)    # (C, bt*n)
        z16 = z.astype(jnp.bfloat16)
        v16 = v.astype(jnp.bfloat16)

        # Per-batch (n, n) attention.  bt is a tiny static trip count; a static
        # unrolled loop keeps every lane slice static (no dynamic lane offsets).
        o_parts = []
        for b in range(bt):
            lo, hi = b * n, (b + 1) * n
            xs = x16[:, lo:hi]                             # (C, n) bf16
            zs = z16[:, lo:hi]                             # (C, n) bf16

            # energy[i, j] = x_i^T Wqk x_j + (bq Wk) . x_j
            energy = lax.dot_general(
                xs, zs, (((0,), (0,)), ((), ())),
                preferred_element_type=jnp.float32)        # (n, n) f32
            energy = energy + r[:, lo:hi]                  # (1, n) bcast over rows

            # Numerically-stable softmax over j; f32 math, EUP reciprocal.
            m = jnp.max(energy, axis=-1, keepdims=True)
            e = jnp.exp(energy - m)
            denom = jnp.sum(e, axis=-1, keepdims=True)
            attn = e * pl.reciprocal(denom, approx=True)   # (n, n) f32

            # o[c, i] = sum_j v[c, j] * attn[i, j]   (rhs-contracted dot_general)
            o_parts.append(lax.dot_general(
                v16[:, lo:hi], attn.astype(jnp.bfloat16),
                (((1,), (1,)), ((), ())),
                preferred_element_type=jnp.float32))       # (C, n) f32

        o = o_parts[0] if bt == 1 else jnp.concatenate(o_parts, axis=-1)

        # Single lane-dense store.  bv enters as gamma*bv (softmax rows sum to 1).
        out_ref[...] = gamma_ref[0, 0] * o + gbv_ref[...] + xb

    return kernel


def _pick_batch_block(B, C, N):
    """Batch elements per grid step.

    Targets: (a) lane-dense tiles, bt*N >= 128 (unmasked vst + full MXU lane
    width); (b) >=2 grid blocks when the batch allows, so both v7x TensorCores
    get work; (c) per-step VMEM well under v7x's 32 MiB scoped default
    (energy/attn scale as bt*N^2; x/z/v/out as C*bt*N, double-buffered blocks).
    """
    bt = min(B, max(pl.cdiv(128, N), pl.cdiv(B, 2)))

    def step_bytes(bt_):
        return bt_ * N * N * 8 + 12 * C * bt_ * N

    while bt > 1 and step_bytes(bt) > (8 << 20):
        bt -= 1
    while B % bt:          # keep the grid exact
        bt -= 1
    return bt


def self_attention_conv(x_nchw, wq, bq, wk, bk, wv, bv, gamma, *, batch_block=None):
    """x_nchw: (B, C, W, H) float32 — same axis convention as the PyTorch module.

    Parameter shapes (1x1 conv weights squeezed):
      wq, wk: (C//8, C)   bq, bk: (C//8,)   wv: (C, C)   bv: (C,)   gamma: (1,)
    bk only contributes row-constant energy terms that cancel in softmax(dim=-1),
    so it is not needed by the kernel (kept for signature parity).
    """
    B, C, W, H = x_nchw.shape
    N = W * H
    bt = batch_block if batch_block is not None else _pick_batch_block(B, C, N)
    assert B % bt == 0

    # Channel-major with batches concatenated on the lane axis: (C, B*N).
    # This O(B*C*N)-byte permute (16 KiB at the test size) is what makes every
    # in-kernel store lane-dense and the shared matmuls full MXU width.
    x_cm = jnp.transpose(x_nchw, (1, 0, 2, 3)).reshape(C, B * N)

    # One-time, trace-level weight prep (folded Q/K, folded bv), bf16 operands.
    f32 = jnp.float32
    wqk = (wq.astype(f32).T @ wk.astype(f32)).astype(jnp.bfloat16)        # (C, C)
    rk = (bq.astype(f32) @ wk.astype(f32)).reshape(1, C).astype(jnp.bfloat16)
    wv16 = wv.astype(jnp.bfloat16)                                        # (C, C)
    gamma_f = jnp.asarray(gamma, f32).reshape(())
    gbv = (gamma_f * bv.astype(f32)).reshape(C, 1)                        # (C, 1)
    gamma_s = gamma_f.reshape(1, 1)                                       # SMEM scalar

    out_cm = pl.pallas_call(
        _make_kernel(bt, N),
        out_shape=jax.ShapeDtypeStruct((C, B * N), x_cm.dtype),
        grid_spec=pltpu.PrefetchScalarGridSpec(
            num_scalar_prefetch=0,
            grid=(B // bt,),
            in_specs=[
                # (8,128) rule: last two block dims divisible by (8,128) or full.
                pl.BlockSpec((C, bt * N), lambda i: (0, i)),              # x
                pl.BlockSpec((C, C), lambda i: (0, 0)),                   # Wqk = Wq^T Wk
                pl.BlockSpec((1, C), lambda i: (0, 0)),                   # rk  = bq Wk
                pl.BlockSpec((C, C), lambda i: (0, 0)),                   # Wv
                pl.BlockSpec((C, 1), lambda i: (0, 0)),                   # gamma*bv
                pl.BlockSpec(memory_space=pltpu.MemorySpace.SMEM),        # gamma
            ],
            out_specs=pl.BlockSpec((C, bt * N), lambda i: (0, i)),
        ),
        compiler_params=pltpu.CompilerParams(
            dimension_semantics=("parallel",)),
    )(x_cm, wqk, rk, wv16, gbv, gamma_s)

    # Permute back to NCHW (same tiny O(B*C*N) move as the input permute).
    return jnp.transpose(out_cm.reshape(C, B, W, H), (1, 0, 2, 3))


def reference_forward(x, wq, bq, wk, bk, wv, bv, gamma):
    """Pure-JAX f32 mirror of the PyTorch forward (all bias terms included)."""
    B, C, W, H = x.shape
    N = W * H
    xf = x.reshape(B, C, N)
    q = jnp.einsum('oc,bcn->bon', wq, xf) + bq.reshape(1, -1, 1)          # (B, Cq, N)
    k = jnp.einsum('oc,bcn->bon', wk, xf) + bk.reshape(1, -1, 1)          # (B, Cq, N)
    v = jnp.einsum('oc,bcn->bon', wv, xf) + bv.reshape(1, -1, 1)          # (B, C, N)
    energy = jnp.einsum('bci,bcj->bij', q, k)                             # (B, N, N)
    attn = jax.nn.softmax(energy, axis=-1)
    out = jnp.einsum('bcj,bij->bci', v, attn)                             # (B, C, N)
    return gamma.reshape(()) * out.reshape(B, C, W, H) + x


if __name__ == "__main__":
    key = jax.random.PRNGKey(0)
    B, C, W, H = 2, 32, 8, 8           # in_dim = 32  ->  C//8 = 4
    Cq = C // 8
    ks = jax.random.split(key, 7)

    x  = jax.random.normal(ks[0], (B, C, W, H), jnp.float32)
    wq = jax.random.normal(ks[1], (Cq, C), jnp.float32) * 0.1
    bq = jax.random.normal(ks[2], (Cq,), jnp.float32) * 0.1
    wk = jax.random.normal(ks[3], (Cq, C), jnp.float32) * 0.1
    bk = jax.random.normal(ks[4], (Cq,), jnp.float32) * 0.1
    wv = jax.random.normal(ks[5], (C, C),  jnp.float32) * 0.1
    bv = jax.random.normal(ks[6], (C,),    jnp.float32) * 0.1
    # Module inits gamma to zero (out == x); use a nonzero deterministic value
    # so the attention path is actually exercised.
    gamma = jnp.full((1,), 0.5, jnp.float32)

    out = self_attention_conv(x, wq, bq, wk, bk, wv, bv, gamma)
    out = jax.block_until_ready(out)

    ref = reference_forward(x, wq, bq, wk, bk, wv, bv, gamma)
    assert out.shape == x.shape and out.dtype == x.dtype
    err = float(jnp.max(jnp.abs(out - ref)))
    # Tolerance covers bf16 MXU operands (f32 accumulation) + the EUP approx
    # reciprocal in the softmax denom; typical max|err| here is ~1e-3.
    assert jnp.allclose(out, ref, atol=1e-2, rtol=1e-2), err

    print("KERNEL_OK")
</pallas_src>

<mosaic_0001>
module attributes {stable_mosaic.version = 11 : i64} {
  func.func @kernel(%arg0: i32, %arg1: memref<32x128xf32, #tpu.memory_space<vmem>>, %arg2: memref<32x32xbf16, #tpu.memory_space<vmem>>, %arg3: memref<1x32xbf16, #tpu.memory_space<vmem>>, %arg4: memref<32x32xbf16, #tpu.memory_space<vmem>>, %arg5: memref<32x1xf32, #tpu.memory_space<vmem>>, %arg6: memref<1x1xf32, #tpu.memory_space<smem>>, %arg7: memref<32x128xf32, #tpu.memory_space<vmem>>) attributes {dimension_semantics = [#tpu.dimension_semantics<parallel>], iteration_bounds = array<i64: 1>, scalar_prefetch = 0 : i64, scratch_operands = 0 : i64, tpu.core_type = #tpu.core_type<tc>, window_params = [{transform_indices = @transform_0, window_bounds = array<i64: 32, 128>}, {pipeline_mode = #tpu.pipeline_mode<synchronous>, transform_indices = @transform_1, window_bounds = array<i64: 32, 32>}, {pipeline_mode = #tpu.pipeline_mode<synchronous>, transform_indices = @transform_2, window_bounds = array<i64: 1, 32>}, {pipeline_mode = #tpu.pipeline_mode<synchronous>, transform_indices = @transform_3, window_bounds = array<i64: 32, 32>}, {pipeline_mode = #tpu.pipeline_mode<synchronous>, transform_indices = @transform_4, window_bounds = array<i64: 32, 1>}, {transform_indices = @transform_5, window_bounds = array<i64: 1, 1>}, {transform_indices = @transform_6, window_bounds = array<i64: 32, 128>}]} {
    %c0 = arith.constant 0 : index
    %c0_0 = arith.constant 0 : index
    %0 = vector.load %arg1[%c0, %c0_0] : memref<32x128xf32, #tpu.memory_space<vmem>>, vector<32x128xf32>
    %1 = arith.truncf %0 : vector<32x128xf32> to vector<32x128xbf16>
    %c0_1 = arith.constant 0 : index
    %c0_2 = arith.constant 0 : index
    %2 = vector.load %arg2[%c0_1, %c0_2] : memref<32x32xbf16, #tpu.memory_space<vmem>>, vector<32x32xbf16>
    %cst = arith.constant dense<0.000000e+00> : vector<32x128xf32>
    %3 = tpu.matmul %2, %1, %cst {dimension_numbers = #tpu.dot_dimension_numbers<[1], [0], [0], [1], [0, 0, 1, 1], [], []>} : vector<32x32xbf16>, vector<32x128xbf16>, vector<32x128xf32> -> vector<32x128xf32>
    %c0_3 = arith.constant 0 : index
    %c0_4 = arith.constant 0 : index
    %4 = vector.load %arg3[%c0_3, %c0_4] : memref<1x32xbf16, #tpu.memory_space<vmem>>, vector<1x32xbf16>
    %cst_5 = arith.constant dense<0.000000e+00> : vector<1x128xf32>
    %5 = tpu.matmul %4, %1, %cst_5 {dimension_numbers = #tpu.dot_dimension_numbers<[1], [0], [0], [1], [0, 0, 1, 1], [], []>} : vector<1x32xbf16>, vector<32x128xbf16>, vector<1x128xf32> -> vector<1x128xf32>
    %c0_6 = arith.constant 0 : index
    %c0_7 = arith.constant 0 : index
    %6 = vector.load %arg4[%c0_6, %c0_7] : memref<32x32xbf16, #tpu.memory_space<vmem>>, vector<32x32xbf16>
    %cst_8 = arith.constant dense<0.000000e+00> : vector<32x128xf32>
    %7 = tpu.matmul %6, %1, %cst_8 {dimension_numbers = #tpu.dot_dimension_numbers<[1], [0], [0], [1], [0, 0, 1, 1], [], []>} : vector<32x32xbf16>, vector<32x128xbf16>, vector<32x128xf32> -> vector<32x128xf32>
    %8 = arith.truncf %3 : vector<32x128xf32> to vector<32x128xbf16>
    %9 = arith.truncf %7 : vector<32x128xf32> to vector<32x128xbf16>
    %10 = vector.extract_strided_slice %1 {offsets = [0, 0], sizes = [32, 64], strides = [1, 1]} : vector<32x128xbf16> to vector<32x64xbf16>
    %11 = vector.extract_strided_slice %8 {offsets = [0, 0], sizes = [32, 64], strides = [1, 1]} : vector<32x128xbf16> to vector<32x64xbf16>
    %cst_9 = arith.constant dense<0.000000e+00> : vector<64x64xf32>
    %12 = tpu.matmul %10, %11, %cst_9 {dimension_numbers = #tpu.dot_dimension_numbers<[0], [0], [1], [1], [0, 1, 1, 1], [], []>} : vector<32x64xbf16>, vector<32x64xbf16>, vector<64x64xf32> -> vector<64x64xf32>
    %13 = vector.extract_strided_slice %5 {offsets = [0, 0], sizes = [1, 64], strides = [1, 1]} : vector<1x128xf32> to vector<1x64xf32>
    %14 = vector.broadcast %13 : vector<1x64xf32> to vector<64x64xf32>
    %15 = arith.addf %12, %14 : vector<64x64xf32>
    %cst_10 = arith.constant dense<0xFF800000> : vector<64xf32>
    %16 = vector.multi_reduction <maximumf>, %15, %cst_10 [1] : vector<64x64xf32> to vector<64xf32>
    %17 = vector.shape_cast %16 : vector<64xf32> to vector<64x1xf32>
    %18 = vector.broadcast %17 : vector<64x1xf32> to vector<64x64xf32>
    %19 = arith.subf %15, %18 : vector<64x64xf32>
    %20 = math.exp %19 : vector<64x64xf32>
    %cst_11 = arith.constant dense<0.000000e+00> : vector<64xf32>
    %21 = vector.multi_reduction <add>, %20, %cst_11 [1] : vector<64x64xf32> to vector<64xf32>
    %22 = vector.shape_cast %21 : vector<64xf32> to vector<64x1xf32>
    %23 = tpu.reciprocal %22 {approx = true} : vector<64x1xf32> -> vector<64x1xf32>
    %24 = vector.broadcast %23 : vector<64x1xf32> to vector<64x64xf32>
    %25 = arith.mulf %20, %24 : vector<64x64xf32>
    %26 = vector.extract_strided_slice %9 {offsets = [0, 0], sizes = [32, 64], strides = [1, 1]} : vector<32x128xbf16> to vector<32x64xbf16>
    %27 = arith.truncf %25 : vector<64x64xf32> to vector<64x64xbf16>
    %cst_12 = arith.constant dense<0.000000e+00> : vector<32x64xf32>
    %28 = tpu.matmul %26, %27, %cst_12 {dimension_numbers = #tpu.dot_dimension_numbers<[1], [1], [0], [0], [0, 0, 1, 0], [], []>} : vector<32x64xbf16>, vector<64x64xbf16>, vector<32x64xf32> -> vector<32x64xf32>
    %29 = vector.extract_strided_slice %1 {offsets = [0, 64], sizes = [32, 64], strides = [1, 1]} : vector<32x128xbf16> to vector<32x64xbf16>
    %30 = vector.extract_strided_slice %8 {offsets = [0, 64], sizes = [32, 64], strides = [1, 1]} : vector<32x128xbf16> to vector<32x64xbf16>
    %cst_13 = arith.constant dense<0.000000e+00> : vector<64x64xf32>
    %31 = tpu.matmul %29, %30, %cst_13 {dimension_numbers = #tpu.dot_dimension_numbers<[0], [0], [1], [1], [0, 1, 1, 1], [], []>} : vector<32x64xbf16>, vector<32x64xbf16>, vector<64x64xf32> -> vector<64x64xf32>
    %32 = vector.extract_strided_slice %5 {offsets = [0, 64], sizes = [1, 64], strides = [1, 1]} : vector<1x128xf32> to vector<1x64xf32>
    %33 = vector.broadcast %32 : vector<1x64xf32> to vector<64x64xf32>
    %34 = arith.addf %31, %33 : vector<64x64xf32>
    %cst_14 = arith.constant dense<0xFF800000> : vector<64xf32>
    %35 = vector.multi_reduction <maximumf>, %34, %cst_14 [1] : vector<64x64xf32> to vector<64xf32>
    %36 = vector.shape_cast %35 : vector<64xf32> to vector<64x1xf32>
    %37 = vector.broadcast %36 : vector<64x1xf32> to vector<64x64xf32>
    %38 = arith.subf %34, %37 : vector<64x64xf32>
    %39 = math.exp %38 : vector<64x64xf32>
    %cst_15 = arith.constant dense<0.000000e+00> : vector<64xf32>
    %40 = vector.multi_reduction <add>, %39, %cst_15 [1] : vector<64x64xf32> to vector<64xf32>
    %41 = vector.shape_cast %40 : vector<64xf32> to vector<64x1xf32>
    %42 = tpu.reciprocal %41 {approx = true} : vector<64x1xf32> -> vector<64x1xf32>
    %43 = vector.broadcast %42 : vector<64x1xf32> to vector<64x64xf32>
    %44 = arith.mulf %39, %43 : vector<64x64xf32>
    %45 = vector.extract_strided_slice %9 {offsets = [0, 64], sizes = [32, 64], strides = [1, 1]} : vector<32x128xbf16> to vector<32x64xbf16>
    %46 = arith.truncf %44 : vector<64x64xf32> to vector<64x64xbf16>
    %cst_16 = arith.constant dense<0.000000e+00> : vector<32x64xf32>
    %47 = tpu.matmul %45, %46, %cst_16 {dimension_numbers = #tpu.dot_dimension_numbers<[1], [1], [0], [0], [0, 0, 1, 0], [], []>} : vector<32x64xbf16>, vector<64x64xbf16>, vector<32x64xf32> -> vector<32x64xf32>
    %48 = tpu.concatenate %28, %47 in 1 : vector<32x64xf32>, vector<32x64xf32> -> vector<32x128xf32>
    %c0_17 = arith.constant 0 : index
    %c0_18 = arith.constant 0 : index
    %49 = memref.load %arg6[%c0_17, %c0_18] : memref<1x1xf32, #tpu.memory_space<smem>>
    %50 = vector.broadcast %49 : f32 to vector<32x128xf32>
    %51 = arith.mulf %50, %48 : vector<32x128xf32>
    %c0_19 = arith.constant 0 : index
    %c0_20 = arith.constant 0 : index
    %52 = vector.load %arg5[%c0_19, %c0_20] : memref<32x1xf32, #tpu.memory_space<vmem>>, vector<32x1xf32>
    %53 = vector.broadcast %52 : vector<32x1xf32> to vector<32x128xf32>
    %54 = arith.addf %51, %53 : vector<32x128xf32>
    %55 = arith.addf %54, %0 : vector<32x128xf32>
    %c0_21 = arith.constant 0 : index
    %c0_22 = arith.constant 0 : index
    %56 = vector.load %arg7[%c0_21, %c0_22] : memref<32x128xf32, #tpu.memory_space<vmem>>, vector<32x128xf32>
    tpu.vector_store %arg7[%c0_21, %c0_22], %55 {strides = array<i32>} : memref<32x128xf32, #tpu.memory_space<vmem>>, vector<32x128xf32>,
    return
  }
  func.func @transform_0(%arg0: i32) -> (i32, i32) {
    %c0_i32 = arith.constant 0 : i32
    %c0_i32_0 = arith.constant 0 : i32
    return %c0_i32, %arg0 : i32, i32
  }
  func.func @transform_1(%arg0: i32) -> (i32, i32) {
    %c0_i32 = arith.constant 0 : i32
    %c0_i32_0 = arith.constant 0 : i32
    %c0_i32_1 = arith.constant 0 : i32
    return %c0_i32, %c0_i32_0 : i32, i32
  }
  func.func @transform_2(%arg0: i32) -> (i32, i32) {
    %c0_i32 = arith.constant 0 : i32
    %c0_i32_0 = arith.constant 0 : i32
    %c0_i32_1 = arith.constant 0 : i32
    return %c0_i32, %c0_i32_0 : i32, i32
  }
  func.func @transform_3(%arg0: i32) -> (i32, i32) {
    %c0_i32 = arith.constant 0 : i32
    %c0_i32_0 = arith.constant 0 : i32
    %c0_i32_1 = arith.constant 0 : i32
    return %c0_i32, %c0_i32_0 : i32, i32
  }
  func.func @transform_4(%arg0: i32) -> (i32, i32) {
    %c0_i32 = arith.constant 0 : i32
    %c0_i32_0 = arith.constant 0 : i32
    %c0_i32_1 = arith.constant 0 : i32
    return %c0_i32, %c0_i32_0 : i32, i32
  }
  func.func @transform_5(%arg0: i32) -> (i32, i32) {
    %c0_i32 = arith.constant 0 : i32
    %c0_i32_0 = arith.constant 0 : i32
    %c0_i32_1 = arith.constant 0 : i32
    return %c0_i32, %c0_i32_0 : i32, i32
  }
  func.func @transform_6(%arg0: i32) -> (i32, i32) {
    %c0_i32 = arith.constant 0 : i32
    %c0_i32_0 = arith.constant 0 : i32
    return %c0_i32, %arg0 : i32, i32
  }
}

</mosaic_0001>

<llo_original>
// kernel: tpu_custom_call.1
$region0: #{tpu_custom_call.1}
  #allocation0 [shape = 'u32[]', space=smem, size = 0x4, offset = 0x4, fixed_abs, tag = 'smem constant byte address 0x4 - core index']
  #allocation1 [shape = 'u32[144,128]{1,0:T(1,128)}', space=vmem, size = 0x12000, scoped, tag = 'internal scratch']
  #allocation2 [shape = 'f32[1,1]{1,0:T(1,128)S(6)}', space=smem, size = 0x200, scoped, tag = 'scoped memory for tpu_custom_call.1']
  %s0 = inlined_call_operand.vmem [shape: f32[32,128], index: 0, kind: input, shape index: {}]
  %s1 = inlined_call_operand.hbm [shape: bf16[32,32], index: 1, kind: input, shape index: {}]
  %s2 = inlined_call_operand.hbm [shape: bf16[1,32], index: 2, kind: input, shape index: {}]
  %s3 = inlined_call_operand.vmem [shape: bf16[32,32], index: 3, kind: input, shape index: {}]
  %s4 = inlined_call_operand.vmem [shape: f32[32,1], index: 4, kind: input, shape index: {}]
  %s5 = inlined_call_operand.<no memory space> [shape: f32[1,1], index: 5, kind: input, shape index: {}]
  %s6 = inlined_call_operand.hbm [shape: f32[32,128], index: 6, kind: output, shape index: {}]
  %s7 = sld [smem:[#allocation0]]
  $region42: #{tpu_custom_call.1} parent=0
    _
  %s9 = ssub.s32 1, %s7
  %s10 = scalar_select 0, %s9, %s7
  %11 = sst [smem:[#allocation2]] %s5
  $region1: #{tpu_custom_call.1} parent=0
    #allocation3 [shape = 'u8[8192]{0}', space=vmem, size = 0x2000, scoped, tag = 'input window, operand 1, single buffered']
    #allocation4 [shape = 's32[1]{0}', space=sflag, size = 0x4, scoped, tag = 'scoped memory for tpu_custom_call.1']
    #allocation5 [shape = 's32[1]{0}', space=sflag, size = 0x4, scoped, tag = 'scoped memory for tpu_custom_call.1']
    #allocation6 [shape = 'u8[512]{0}', space=vmem, size = 0x400, scoped, tag = 'input window, operand 2, single buffered']
    #allocation7 [shape = 's32[1]{0}', space=sflag, size = 0x4, scoped, tag = 'scoped memory for tpu_custom_call.1']
    #allocation8 [shape = 'u8[16384]{0}', space=vmem, size = 0x4000, scoped, tag = 'output window, operand 0, single buffered']
    %12 = vsyncpa [#allocation4], 0
    %13 = vsyncpa [#allocation7], 0
    %14 = vsyncpa [#allocation5], 0
    // Predicated region
    $region2: #{tpu_custom_call.1} parent=1 // pred_check
      _
    $region3: #{tpu_custom_call.1} parent=1 // pred_check_branch
      %16 = sbr.rel (0) target = $region5
    $region4: #{tpu_custom_call.1} parent=1 // pred_region
      _
    $region5: #{tpu_custom_call.1} parent=1 // pred_fallthru
      _
    // Predicated region
    $region6: #{tpu_custom_call.1} parent=1 // pred_check
      _
    $region7: #{tpu_custom_call.1} parent=1 // pred_check_branch
      %18 = sbr.rel (0) target = $region9
    $region8: #{tpu_custom_call.1} parent=1 // pred_region
      %s20 = ssub.s32 256, 256
      %21 = vsyncadd [#allocation4], %s20
      %s22 = sshll.u32 [#allocation3], 4
      %s23 = int_to_ptr.vmem [resolvable:$true] %s22
      %28 = dma.hbm_to_vmem [thread:$0]  %s1, 256, %s23, [#allocation4], 64, 64, 4
    $region9: #{tpu_custom_call.1} parent=1 // pred_fallthru
      _
    // Predicated region
    $region10: #{tpu_custom_call.1} parent=1 // pred_check
      _
    $region11: #{tpu_custom_call.1} parent=1 // pred_check_branch
      %30 = sbr.rel (0) target = $region13
    $region12: #{tpu_custom_call.1} parent=1 // pred_region
      %s32 = ssub.s32 16, 16
      %33 = vsyncadd [#allocation7], %s32
      %s35 = sshll.u32 [#allocation6], 4
      %s36 = int_to_ptr.vmem [resolvable:$true] %s35
      %38 = dma.hbm_to_vmem [thread:$0]  %s2, 16, %s36, [#allocation7]
    $region13: #{tpu_custom_call.1} parent=1 // pred_fallthru
      _
    // Predicated region
    $region14: #{tpu_custom_call.1} parent=1 // pred_check
      _
    $region15: #{tpu_custom_call.1} parent=1 // pred_check_branch
      %40 = sbr.rel (0) target = $region17
    $region16: #{tpu_custom_call.1} parent=1 // pred_region
      _
    $region17: #{tpu_custom_call.1} parent=1 // pred_fallthru
      _
    // Predicated region
    $region18: #{tpu_custom_call.1} parent=1 // pred_check
      _
    $region19: #{tpu_custom_call.1} parent=1 // pred_check_branch
      %42 = sbr.rel (0) target = $region21
    $region20: #{tpu_custom_call.1} parent=1 // pred_region
      _
    $region21: #{tpu_custom_call.1} parent=1 // pred_fallthru
      _
    // Predicated region
    $region22: #{tpu_custom_call.1} parent=1 // pred_check
      _
    $region23: #{tpu_custom_call.1} parent=1 // pred_check_branch
      %44 = sbr.rel (0) target = $region25
    $region24: #{tpu_custom_call.1} parent=1 // pred_region
      _
    $region25: #{tpu_custom_call.1} parent=1 // pred_fallthru
      _
    // Predicated region
    $region26: #{tpu_custom_call.1} parent=1 // pred_check
      _
    $region27: #{tpu_custom_call.1} parent=1 // pred_check_branch
      %46 = sbr.rel (0) target = $region29
    $region28: #{tpu_custom_call.1} parent=1 // pred_region
      %47 = dma.done [#allocation4], 256
    $region29: #{tpu_custom_call.1} parent=1 // pred_fallthru
      _
    // Predicated region
    $region30: #{tpu_custom_call.1} parent=1 // pred_check
      _
    $region31: #{tpu_custom_call.1} parent=1 // pred_check_branch
      %49 = sbr.rel (0) target = $region33
    $region32: #{tpu_custom_call.1} parent=1 // pred_region
      %50 = dma.done [#allocation7], 16
    $region33: #{tpu_custom_call.1} parent=1 // pred_fallthru
      _
    %v52 = vld [vmem:[%s0] sm:$0xff]
    %v53 = vld [vmem:[%s0 + $0x8] sm:$0xff]
    %v54 = vld [vmem:[%s0 + $0x10] sm:$0xff]
    %v55 = vld [vmem:[%s0 + $0x18] sm:$0xff]
    %v56 = vpack.c.bf16 %v53, %v52
    %v57 = vpack.c.bf16 %v55, %v54
    %v58 = vld [vmem:[#allocation3] sm:$0xf]
    %v59 = vld [vmem:[#allocation3 + $0x4] sm:$0xf]
    %v60 = vld [vmem:[#allocation3 + $0x8] sm:$0xf]
    %v61 = vld [vmem:[#allocation3 + $0xc] sm:$0xf]
    %v66 = vunpack.c.l.b16 %v58
    %v67 = vunpack.c.l.b16 %v59
    %v68 = vunpack.c.l.b16 %v60
    %v69 = vunpack.c.l.b16 %v61
    %v70 = vpack.c.b16 %v67, %v66
    %v71 = vpack.c.b16 %v69, %v68
    %vm72 = vcmask 261120
    %v74 = vsel %vm72, %v70, 0
    %v77 = vsel %vm72, %v71, 0
    %79 = vmatprep.subr.bf16.mxu0 0
    %80 = vmatpush1.bf16.msra.mxu0 %v56
    %81 = vmatprep.subr.bf16.mxu0 0
    %82 = vmatpush1.bf16.msra.mxu0 %v57
    %83 = vmatprep.subr.bf16.mxu0 0
    %84 = vmatpush1.bf16.msra.mxu0 0
    %85 = vmatprep.subr.bf16.mxu0 0
    %86 = vmatpush1.bf16.msra.mxu0 0
    %87 = vmatprep.subr.bf16.mxu0 0
    %88 = vmatpush1.bf16.msra.mxu0 0
    %89 = vmatprep.subr.bf16.mxu0 0
    %90 = vmatpush1.bf16.msra.mxu0 0
    %91 = vmatprep.subr.bf16.mxu0 0
    %92 = vmatpush1.bf16.msra.mxu0 0
    %93 = vmatprep.subr.bf16.mxu0 0
    %94 = vmatpush1.bf16.msra.mxu0 0
    %95 = vmatprep.subr.bf16.mxu0 0
    %96 = vmatpush1.bf16.msra.mxu0 0
    %97 = vmatprep.subr.bf16.mxu0 0
    %98 = vmatpush1.bf16.msra.mxu0 0
    %99 = vmatprep.subr.bf16.mxu0 0
    %100 = vmatpush1.bf16.msra.mxu0 0
    %101 = vmatprep.subr.bf16.mxu0 0
    %102 = vmatpush1.bf16.msra.mxu0 0
    %103 = vmatprep.subr.bf16.mxu0 0
    %104 = vmatpush1.bf16.msra.mxu0 0
    %105 = vmatprep.subr.bf16.mxu0 0
    %106 = vmatpush1.bf16.msra.mxu0 0
    %107 = vmatprep.subr.bf16.mxu0 0
    %108 = vmatpush1.bf16.msra.mxu0 0
    %109 = vmatprep.subr.bf16.mxu0 0
    %110 = vmatpush1.bf16.msra.mxu0 0
    %111 = vmatprep.mubr.bf16.mxu0 0
    %112 = vmatmul.mubr.bf16.gmra.mrb[0].mxu0 %v74
    %v113 = vpop.f32.mrb[0].mxu0
    %v114 = vadd.f32 0.0, %v113
    %v115 = vpop.f32.mrb[0].mxu0
    %v116 = vpop.f32.mrb[0].mxu0
    %v117 = vadd.f32 0.0, %v116
    %v118 = vpop.f32.mrb[0].mxu0
    %119 = vmatprep.mubr.bf16.mxu0 0
    %120 = vmatmul.mubr.bf16.gmra.mrb[0].mxu0 %v77
    %v121 = vpop.f32.mrb[0].mxu0
    %v122 = vadd.f32 0.0, %v121
    %v123 = vpop.f32.mrb[0].mxu0
    %v124 = vpop.f32.mrb[0].mxu0
    %v125 = vadd.f32 0.0, %v124
    %v126 = vpop.f32.mrb[0].mxu0
    %127 = vdwg.mxu0
    %v128 = vld [vmem:[#allocation6] sm:$0x1]
    %v130 = vsel %vm72, %v128, 0
    %132 = vmatprep.subr.bf16.mxu0 0
    %133 = vmatpush1.bf16.msra.mxu0 %v56
    %134 = vmatprep.subr.bf16.mxu0 0
    %135 = vmatpush1.bf16.msra.mxu0 %v57
    %136 = vmatprep.subr.bf16.mxu0 0
    %137 = vmatpush1.bf16.msra.mxu0 0
    %138 = vmatprep.subr.bf16.mxu0 0
    %139 = vmatpush1.bf16.msra.mxu0 0
    %140 = vmatprep.subr.bf16.mxu0 0
    %141 = vmatpush1.bf16.msra.mxu0 0
    %142 = vmatprep.subr.bf16.mxu0 0
    %143 = vmatpush1.bf16.msra.mxu0 0
    %144 = vmatprep.subr.bf16.mxu0 0
    %145 = vmatpush1.bf16.msra.mxu0 0
    %146 = vmatprep.subr.bf16.mxu0 0
    %147 = vmatpush1.bf16.msra.mxu0 0
    %148 = vmatprep.subr.bf16.mxu0 0
    %149 = vmatpush1.bf16.msra.mxu0 0
    %150 = vmatprep.subr.bf16.mxu0 0
    %151 = vmatpush1.bf16.msra.mxu0 0
    %152 = vmatprep.subr.bf16.mxu0 0
    %153 = vmatpush1.bf16.msra.mxu0 0
    %154 = vmatprep.subr.bf16.mxu0 0
    %155 = vmatpush1.bf16.msra.mxu0 0
    %156 = vmatprep.subr.bf16.mxu0 0
    %157 = vmatpush1.bf16.msra.mxu0 0
    %158 = vmatprep.subr.bf16.mxu0 0
    %159 = vmatpush1.bf16.msra.mxu0 0
    %160 = vmatprep.subr.bf16.mxu0 0
    %161 = vmatpush1.bf16.msra.mxu0 0
    %162 = vmatprep.subr.bf16.mxu0 0
    %163 = vmatpush1.bf16.msra.mxu0 0
    %164 = vmatprep.mubr.bf16.mxu0 0
    %165 = vmatmul.mubr.bf16.gmra.mrb[0].mxu0 %v130
    %v166 = vpop.f32.mrb[0].mxu0
    %v167 = vadd.f32 0.0, %v166
    %v168 = vpop.f32.mrb[0].mxu0
    %v169 = vpop.f32.mrb[0].mxu0
    %v170 = vpop.f32.mrb[0].mxu0
    %171 = vdwg.mxu0
    %v172 = vld [vmem:[%s3] sm:$0xf]
    %v173 = vld [vmem:[%s3 + $0x4] sm:$0xf]
    %v174 = vld [vmem:[%s3 + $0x8] sm:$0xf]
    %v175 = vld [vmem:[%s3 + $0xc] sm:$0xf]
    %v180 = vunpack.c.l.b16 %v172
    %v181 = vunpack.c.l.b16 %v173
    %v182 = vunpack.c.l.b16 %v174
    %v183 = vunpack.c.l.b16 %v175
    %v184 = vpack.c.b16 %v181, %v180
    %v185 = vpack.c.b16 %v183, %v182
    %v187 = vsel %vm72, %v184, 0
    %v190 = vsel %vm72, %v185, 0
    %192 = vmatprep.subr.bf16.mxu0 0
    %193 = vmatpush1.bf16.msra.mxu0 %v56
    %194 = vmatprep.subr.bf16.mxu0 0
    %195 = vmatpush1.bf16.msra.mxu0 %v57
    %196 = vmatprep.subr.bf16.mxu0 0
    %197 = vmatpush1.bf16.msra.mxu0 0
    %198 = vmatprep.subr.bf16.mxu0 0
    %199 = vmatpush1.bf16.msra.mxu0 0
    %200 = vmatprep.subr.bf16.mxu0 0
    %201 = vmatpush1.bf16.msra.mxu0 0
    %202 = vmatprep.subr.bf16.mxu0 0
    %203 = vmatpush1.bf16.msra.mxu0 0
    %204 = vmatprep.subr.bf16.mxu0 0
    %205 = vmatpush1.bf16.msra.mxu0 0
    %206 = vmatprep.subr.bf16.mxu0 0
    %207 = vmatpush1.bf16.msra.mxu0 0
    %208 = vmatprep.subr.bf16.mxu0 0
    %209 = vmatpush1.bf16.msra.mxu0 0
    %210 = vmatprep.subr.bf16.mxu0 0
    %211 = vmatpush1.bf16.msra.mxu0 0
    %212 = vmatprep.subr.bf16.mxu0 0
    %213 = vmatpush1.bf16.msra.mxu0 0
    %214 = vmatprep.subr.bf16.mxu0 0
    %215 = vmatpush1.bf16.msra.mxu0 0
    %216 = vmatprep.subr.bf16.mxu0 0
    %217 = vmatpush1.bf16.msra.mxu0 0
    %218 = vmatprep.subr.bf16.mxu0 0
    %219 = vmatpush1.bf16.msra.mxu0 0
    %220 = vmatprep.subr.bf16.mxu0 0
    %221 = vmatpush1.bf16.msra.mxu0 0
    %222 = vmatprep.subr.bf16.mxu0 0
    %223 = vmatpush1.bf16.msra.mxu0 0
    %224 = vmatprep.mubr.bf16.mxu0 0
    %225 = vmatmul.mubr.bf16.gmra.mrb[0].mxu0 %v187
    %v226 = vpop.f32.mrb[0].mxu0
    %v227 = vadd.f32 0.0, %v226
    %v228 = vpop.f32.mrb[0].mxu0
    %v229 = vpop.f32.mrb[0].mxu0
    %v230 = vadd.f32 0.0, %v229
    %v231 = vpop.f32.mrb[0].mxu0
    %232 = vmatprep.mubr.bf16.mxu0 0
    %233 = vmatmul.mubr.bf16.gmra.mrb[0].mxu0 %v190
    %v234 = vpop.f32.mrb[0].mxu0
    %v235 = vadd.f32 0.0, %v234
    %v236 = vpop.f32.mrb[0].mxu0
    %v237 = vpop.f32.mrb[0].mxu0
    %v238 = vadd.f32 0.0, %v237
    %v239 = vpop.f32.mrb[0].mxu0
    %240 = vdwg.mxu0
    %v241 = vpack.c.bf16 %v117, %v114
    %v242 = vpack.c.bf16 %v125, %v122
    %v243 = vpack.c.bf16 %v230, %v227
    %v244 = vpack.c.bf16 %v238, %v235
    %v245 = vlaneseq
    %v246 = vshrl.u32 %v245, 7
    %v247 = vsub.s32 0, %v246
    %v248 = vrot.slane %v167, %v247
    %249 = vxpose.xlu0.c.b16.start [1/8] %v56, 128
    %250 = vxpose.xlu0.c.b16.cont [2/8] %v57, 128
    %251 = vxpose.xlu0.c.b16.cont [3/8] 0, 128
    %252 = vxpose.xlu0.c.b16.cont [4/8] 0, 128
    %253 = vxpose.xlu0.c.b16.cont [5/8] 0, 128
    %254 = vxpose.xlu0.c.b16.cont [6/8] 0, 128
    %255 = vxpose.xlu0.c.b16.cont [7/8] 0, 128
    %256 = vxpose.xlu0.c.b16.end [8/8] 0, 128
    %v257 = vpop.trf.xlu0
    %v258 = vpop.trf.xlu0
    %v259 = vpop.trf.xlu0
    %v260 = vpop.trf.xlu0
    %v261 = vpop.trf.xlu0
    %v262 = vpop.trf.xlu0
    %v263 = vpop.trf.xlu0
    %v264 = vpop.trf.xlu0
    %v266 = vsel %vm72, %v257, 0
    %v269 = vsel %vm72, %v258, 0
    %v272 = vsel %vm72, %v259, 0
    %v275 = vsel %vm72, %v260, 0
    %277 = vmatprep.subr.bf16.mxu0 0
    %278 = vmatpush1.bf16.msra.mxu0 %v241
    %279 = vmatprep.subr.bf16.mxu0 0
    %280 = vmatpush1.bf16.msra.mxu0 %v242
    %281 = vmatprep.subr.bf16.mxu0 0
    %282 = vmatpush1.bf16.msra.mxu0 0
    %283 = vmatprep.subr.bf16.mxu0 0
    %284 = vmatpush1.bf16.msra.mxu0 0
    %285 = vmatprep.subr.bf16.mxu0 0
    %286 = vmatpush1.bf16.msra.mxu0 0
    %287 = vmatprep.subr.bf16.mxu0 0
    %288 = vmatpush1.bf16.msra.mxu0 0
    %289 = vmatprep.subr.bf16.mxu0 0
    %290 = vmatpush1.bf16.msra.mxu0 0
    %291 = vmatprep.subr.bf16.mxu0 0
    %292 = vmatpush1.bf16.msra.mxu0 0
    %293 = vmatprep.subr.bf16.mxu0 0
    %294 = vmatpush1.bf16.msra.mxu0 0
    %295 = vmatprep.subr.bf16.mxu0 0
    %296 = vmatpush1.bf16.msra.mxu0 0
    %297 = vmatprep.subr.bf16.mxu0 0
    %298 = vmatpush1.bf16.msra.mxu0 0
    %299 = vmatprep.subr.bf16.mxu0 0
    %300 = vmatpush1.bf16.msra.mxu0 0
    %301 = vmatprep.subr.bf16.mxu0 0
    %302 = vmatpush1.bf16.msra.mxu0 0
    %303 = vmatprep.subr.bf16.mxu0 0
    %304 = vmatpush1.bf16.msra.mxu0 0
    %305 = vmatprep.subr.bf16.mxu0 0
    %306 = vmatpush1.bf16.msra.mxu0 0
    %307 = vmatprep.subr.bf16.mxu0 0
    %308 = vmatpush1.bf16.msra.mxu0 0
    %309 = vmatprep.mubr.bf16.mxu0 0
    %310 = vmatmul.mubr.bf16.gmra.mrb[0].mxu0 %v266
    %v311 = vpop.f32.mrb[0].mxu0
    %v312 = vadd.f32 %v248, %v311
    %v313 = vpop.f32.mrb[0].mxu0
    %v314 = vpop.f32.mrb[0].mxu0
    %v315 = vadd.f32 %v248, %v314
    %v316 = vpop.f32.mrb[0].mxu0
    %317 = vmatprep.mubr.bf16.mxu0 0
    %318 = vmatmul.mubr.bf16.gmra.mrb[0].mxu0 %v269
    %v319 = vpop.f32.mrb[0].mxu0
    %v320 = vadd.f32 %v248, %v319
    %v321 = vpop.f32.mrb[0].mxu0
    %v322 = vpop.f32.mrb[0].mxu0
    %v323 = vadd.f32 %v248, %v322
    %v324 = vpop.f32.mrb[0].mxu0
    %325 = vmatprep.mubr.bf16.mxu0 0
    %326 = vmatmul.mubr.bf16.gmra.mrb[0].mxu0 %v272
    %v327 = vpop.f32.mrb[0].mxu0
    %v328 = vadd.f32 %v248, %v327
    %v329 = vpop.f32.mrb[0].mxu0
    %v330 = vpop.f32.mrb[0].mxu0
    %v331 = vadd.f32 %v248, %v330
    %v332 = vpop.f32.mrb[0].mxu0
    %333 = vmatprep.mubr.bf16.mxu0 0
    %334 = vmatmul.mubr.bf16.gmra.mrb[0].mxu0 %v275
    %v335 = vpop.f32.mrb[0].mxu0
    %v336 = vadd.f32 %v248, %v335
    %v337 = vpop.f32.mrb[0].mxu0
    %v338 = vpop.f32.mrb[0].mxu0
    %v339 = vadd.f32 %v248, %v338
    %v340 = vpop.f32.mrb[0].mxu0
    %341 = vdwg.mxu0
    %vm342 = vcmask 523264
    %v343 = vsel %vm342, %v312, -inf
    %344 = vmax.xlane.f32.xlu0 %v343
    %v345 = vpop.xlane.xlu0 %344
    %v346 = vsel %vm342, %v315, -inf
    %347 = vmax.xlane.f32.xlu0 %v346
    %v348 = vpop.xlane.xlu0 %347
    %v349 = vsel %vm342, %v320, -inf
    %350 = vmax.xlane.f32.xlu0 %v349
    %v351 = vpop.xlane.xlu0 %350
    %v352 = vsel %vm342, %v323, -inf
    %353 = vmax.xlane.f32.xlu0 %v352
    %v354 = vpop.xlane.xlu0 %353
    %v355 = vsel %vm342, %v328, -inf
    %356 = vmax.xlane.f32.xlu0 %v355
    %v357 = vpop.xlane.xlu0 %356
    %v358 = vsel %vm342, %v331, -inf
    %359 = vmax.xlane.f32.xlu0 %v358
    %v360 = vpop.xlane.xlu0 %359
    %v361 = vsel %vm342, %v336, -inf
    %362 = vmax.xlane.f32.xlu0 %v361
    %v363 = vpop.xlane.xlu0 %362
    %v364 = vsel %vm342, %v339, -inf
    %365 = vmax.xlane.f32.xlu0 %v364
    %v366 = vpop.xlane.xlu0 %365
    %v367 = vsub.f32 %v312, %v345
    %v368 = vsub.f32 %v315, %v348
    %v369 = vsub.f32 %v320, %v351
    %v370 = vsub.f32 %v323, %v354
    %v371 = vsub.f32 %v328, %v357
    %v372 = vsub.f32 %v331, %v360
    %v373 = vsub.f32 %v336, %v363
    %v374 = vsub.f32 %v339, %v366
    %v375 = vmul.f32 %v367, 1.442695
    %v376 = vpow.pop %v375
    %v377 = vmul.f32 %v368, 1.442695
    %v378 = vpow.pop %v377
    %v379 = vmul.f32 %v369, 1.442695
    %v380 = vpow.pop %v379
    %v381 = vmul.f32 %v370, 1.442695
    %v382 = vpow.pop %v381
    %v383 = vmul.f32 %v371, 1.442695
    %v384 = vpow.pop %v383
    %v385 = vmul.f32 %v372, 1.442695
    %v386 = vpow.pop %v385
    %v387 = vmul.f32 %v373, 1.442695
    %v388 = vpow.pop %v387
    %v389 = vmul.f32 %v374, 1.442695
    %v390 = vpow.pop %v389
    %v391 = vsel %vm342, %v376, 0.0
    %392 = vadd.xlane.f32.xlu0 %v391
    %v393 = vpop.xlane.xlu0 %392
    %v394 = vsel %vm342, %v378, 0.0
    %395 = vadd.xlane.f32.xlu0 %v394
    %v396 = vpop.xlane.xlu0 %395
    %v397 = vsel %vm342, %v380, 0.0
    %398 = vadd.xlane.f32.xlu0 %v397
    %v399 = vpop.xlane.xlu0 %398
    %v400 = vsel %vm342, %v382, 0.0
    %401 = vadd.xlane.f32.xlu0 %v400
    %v402 = vpop.xlane.xlu0 %401
    %v403 = vsel %vm342, %v384, 0.0
    %404 = vadd.xlane.f32.xlu0 %v403
    %v405 = vpop.xlane.xlu0 %404
    %v406 = vsel %vm342, %v386, 0.0
    %407 = vadd.xlane.f32.xlu0 %v406
    %v408 = vpop.xlane.xlu0 %407
    %v409 = vsel %vm342, %v388, 0.0
    %410 = vadd.xlane.f32.xlu0 %v409
    %v411 = vpop.xlane.xlu0 %410
    %v412 = vsel %vm342, %v390, 0.0
    %413 = vadd.xlane.f32.xlu0 %v412
    %v414 = vpop.xlane.xlu0 %413
    %v415 = vrcp.pop %v393
    %v416 = vrcp.pop %v396
    %v417 = vrcp.pop %v399
    %v418 = vrcp.pop %v402
    %v419 = vrcp.pop %v405
    %v420 = vrcp.pop %v408
    %v421 = vrcp.pop %v411
    %v422 = vrcp.pop %v414
    %v423 = vmul.f32 %v376, %v415
    %v424 = vmul.f32 %v378, %v416
    %v425 = vmul.f32 %v380, %v417
    %v426 = vmul.f32 %v382, %v418
    %v427 = vmul.f32 %v384, %v419
    %v428 = vmul.f32 %v386, %v420
    %v429 = vmul.f32 %v388, %v421
    %v430 = vmul.f32 %v390, %v422
    %v431 = vpack.c.bf16 %v424, %v423
    %v432 = vpack.c.bf16 %v426, %v425
    %v433 = vpack.c.bf16 %v428, %v427
    %v434 = vpack.c.bf16 %v430, %v429
    %v436 = vsel %vm342, %v243, 0
    %v439 = vsel %vm342, %v244, 0
    %v442 = vsel %vm342, %v431, 0
    %v445 = vsel %vm342, %v432, 0
    %v448 = vsel %vm342, %v433, 0
    %v451 = vsel %vm342, %v434, 0
    %453 = vmatprep.subr.bf16.mxu0 0
    %454 = vmatpush1.bf16.xpose.msra.mxu0 %v442
    %455 = vmatprep.subr.bf16.mxu0 0
    %456 = vmatpush1.bf16.xpose.msra.mxu0 %v445
    %457 = vmatprep.subr.bf16.mxu0 0
    %458 = vmatpush1.bf16.xpose.msra.mxu0 %v448
    %459 = vmatprep.subr.bf16.mxu0 0
    %460 = vmatpush1.bf16.xpose.msra.mxu0 %v451
    %461 = vmatprep.subr.bf16.mxu0 0
    %462 = vmatpush1.bf16.xpose.msra.mxu0 0
    %463 = vmatprep.subr.bf16.mxu0 0
    %464 = vmatpush1.bf16.xpose.msra.mxu0 0
    %465 = vmatprep.subr.bf16.mxu0 0
    %466 = vmatpush1.bf16.xpose.msra.mxu0 0
    %467 = vmatprep.subr.bf16.mxu0 0
    %468 = vmatpush1.bf16.xpose.msra.mxu0 0
    %469 = vmatprep.subr.bf16.mxu0 0
    %470 = vmatpush1.bf16.xpose.msra.mxu0 0
    %471 = vmatprep.subr.bf16.mxu0 0
    %472 = vmatpush1.bf16.xpose.msra.mxu0 0
    %473 = vmatprep.subr.bf16.mxu0 0
    %474 = vmatpush1.bf16.xpose.msra.mxu0 0
    %475 = vmatprep.subr.bf16.mxu0 0
    %476 = vmatpush1.bf16.xpose.msra.mxu0 0
    %477 = vmatprep.subr.bf16.mxu0 0
    %478 = vmatpush1.bf16.xpose.msra.mxu0 0
    %479 = vmatprep.subr.bf16.mxu0 0
    %480 = vmatpush1.bf16.xpose.msra.mxu0 0
    %481 = vmatprep.subr.bf16.mxu0 0
    %482 = vmatpush1.bf16.xpose.msra.mxu0 0
    %483 = vmatprep.subr.bf16.mxu0 0
    %484 = vmatpush1.bf16.xpose.msra.mxu0 0
    %485 = vmatprep.mubr.bf16.mxu0 0
    %486 = vmatmul.mubr.bf16.gmra.mrb[0].mxu0 %v436
    %v487 = vpop.f32.mrb[0].mxu0
    %v488 = vadd.f32 0.0, %v487
    %v489 = vpop.f32.mrb[0].mxu0
    %v490 = vpop.f32.mrb[0].mxu0
    %v491 = vadd.f32 0.0, %v490
    %v492 = vpop.f32.mrb[0].mxu0
    %493 = vmatprep.mubr.bf16.mxu0 0
    %494 = vmatmul.mubr.bf16.gmra.mrb[0].mxu0 %v439
    %v495 = vpop.f32.mrb[0].mxu0
    %v496 = vadd.f32 0.0, %v495
    %v497 = vpop.f32.mrb[0].mxu0
    %v498 = vpop.f32.mrb[0].mxu0
    %v499 = vadd.f32 0.0, %v498
    %v500 = vpop.f32.mrb[0].mxu0
    %501 = vdwg.mxu0
    %504 = vrot.lane.b32.xlu0 %v56, 64
    %v505 = vpop.permute.xlu0 %504
    %506 = vrot.lane.b32.xlu0 %v57, 64
    %v507 = vpop.permute.xlu0 %506
    %510 = vxpose.xlu0.c.b16.start [1/8] %v505, 128
    %511 = vxpose.xlu0.c.b16.cont [2/8] %v507, 128
    %512 = vxpose.xlu0.c.b16.cont [3/8] 0, 128
    %513 = vxpose.xlu0.c.b16.cont [4/8] 0, 128
    %514 = vxpose.xlu0.c.b16.cont [5/8] 0, 128
    %515 = vxpose.xlu0.c.b16.cont [6/8] 0, 128
    %516 = vxpose.xlu0.c.b16.cont [7/8] 0, 128
    %517 = vxpose.xlu0.c.b16.end [8/8] 0, 128
    %v518 = vpop.trf.xlu0
    %v519 = vpop.trf.xlu0
    %v520 = vpop.trf.xlu0
    %v521 = vpop.trf.xlu0
    %v522 = vpop.trf.xlu0
    %v523 = vpop.trf.xlu0
    %v524 = vpop.trf.xlu0
    %v525 = vpop.trf.xlu0
    %528 = vrot.lane.b32.xlu0 %v241, 64
    %v529 = vpop.permute.xlu0 %528
    %530 = vrot.lane.b32.xlu0 %v242, 64
    %v531 = vpop.permute.xlu0 %530
    %535 = vrot.lane.b32.xlu0 %v248, 64
    %v536 = vpop.permute.xlu0 %535
    %v539 = vsel %vm72, %v518, 0
    %v542 = vsel %vm72, %v519, 0
    %v545 = vsel %vm72, %v520, 0
    %v548 = vsel %vm72, %v521, 0
    %550 = vmatprep.subr.bf16.mxu0 0
    %551 = vmatpush1.bf16.msra.mxu0 %v529
    %552 = vmatprep.subr.bf16.mxu0 0
    %553 = vmatpush1.bf16.msra.mxu0 %v531
    %554 = vmatprep.subr.bf16.mxu0 0
    %555 = vmatpush1.bf16.msra.mxu0 0
    %556 = vmatprep.subr.bf16.mxu0 0
    %557 = vmatpush1.bf16.msra.mxu0 0
    %558 = vmatprep.subr.bf16.mxu0 0
    %559 = vmatpush1.bf16.msra.mxu0 0
    %560 = vmatprep.subr.bf16.mxu0 0
    %561 = vmatpush1.bf16.msra.mxu0 0
    %562 = vmatprep.subr.bf16.mxu0 0
    %563 = vmatpush1.bf16.msra.mxu0 0
    %564 = vmatprep.subr.bf16.mxu0 0
    %565 = vmatpush1.bf16.msra.mxu0 0
    %566 = vmatprep.subr.bf16.mxu0 0
    %567 = vmatpush1.bf16.msra.mxu0 0
    %568 = vmatprep.subr.bf16.mxu0 0
    %569 = vmatpush1.bf16.msra.mxu0 0
    %570 = vmatprep.subr.bf16.mxu0 0
    %571 = vmatpush1.bf16.msra.mxu0 0
    %572 = vmatprep.subr.bf16.mxu0 0
    %573 = vmatpush1.bf16.msra.mxu0 0
    %574 = vmatprep.subr.bf16.mxu0 0
    %575 = vmatpush1.bf16.msra.mxu0 0
    %576 = vmatprep.subr.bf16.mxu0 0
    %577 = vmatpush1.bf16.msra.mxu0 0
    %578 = vmatprep.subr.bf16.mxu0 0
    %579 = vmatpush1.bf16.msra.mxu0 0
    %580 = vmatprep.subr.bf16.mxu0 0
    %581 = vmatpush1.bf16.msra.mxu0 0
    %582 = vmatprep.mubr.bf16.mxu0 0
    %583 = vmatmul.mubr.bf16.gmra.mrb[0].mxu0 %v539
    %v584 = vpop.f32.mrb[0].mxu0
    %v585 = vadd.f32 %v536, %v584
    %v586 = vpop.f32.mrb[0].mxu0
    %v587 = vpop.f32.mrb[0].mxu0
    %v588 = vadd.f32 %v536, %v587
    %v589 = vpop.f32.mrb[0].mxu0
    %590 = vmatprep.mubr.bf16.mxu0 0
    %591 = vmatmul.mubr.bf16.gmra.mrb[0].mxu0 %v542
    %v592 = vpop.f32.mrb[0].mxu0
    %v593 = vadd.f32 %v536, %v592
    %v594 = vpop.f32.mrb[0].mxu0
    %v595 = vpop.f32.mrb[0].mxu0
    %v596 = vadd.f32 %v536, %v595
    %v597 = vpop.f32.mrb[0].mxu0
    %598 = vmatprep.mubr.bf16.mxu0 0
    %599 = vmatmul.mubr.bf16.gmra.mrb[0].mxu0 %v545
    %v600 = vpop.f32.mrb[0].mxu0
    %v601 = vadd.f32 %v536, %v600
    %v602 = vpop.f32.mrb[0].mxu0
    %v603 = vpop.f32.mrb[0].mxu0
    %v604 = vadd.f32 %v536, %v603
    %v605 = vpop.f32.mrb[0].mxu0
    %606 = vmatprep.mubr.bf16.mxu0 0
    %607 = vmatmul.mubr.bf16.gmra.mrb[0].mxu0 %v548
    %v608 = vpop.f32.mrb[0].mxu0
    %v609 = vadd.f32 %v536, %v608
    %v610 = vpop.f32.mrb[0].mxu0
    %v611 = vpop.f32.mrb[0].mxu0
    %v612 = vadd.f32 %v536, %v611
    %v613 = vpop.f32.mrb[0].mxu0
    %614 = vdwg.mxu0
    %v615 = vsel %vm342, %v585, -inf
    %616 = vmax.xlane.f32.xlu0 %v615
    %v617 = vpop.xlane.xlu0 %616
    %v618 = vsel %vm342, %v588, -inf
    %619 = vmax.xlane.f32.xlu0 %v618
    %v620 = vpop.xlane.xlu0 %619
    %v621 = vsel %vm342, %v593, -inf
    %622 = vmax.xlane.f32.xlu0 %v621
    %v623 = vpop.xlane.xlu0 %622
    %v624 = vsel %vm342, %v596, -inf
    %625 = vmax.xlane.f32.xlu0 %v624
    %v626 = vpop.xlane.xlu0 %625
    %v627 = vsel %vm342, %v601, -inf
    %628 = vmax.xlane.f32.xlu0 %v627
    %v629 = vpop.xlane.xlu0 %628
    %v630 = vsel %vm342, %v604, -inf
    %631 = vmax.xlane.f32.xlu0 %v630
    %v632 = vpop.xlane.xlu0 %631
    %v633 = vsel %vm342, %v609, -inf
    %634 = vmax.xlane.f32.xlu0 %v633
    %v635 = vpop.xlane.xlu0 %634
    %v636 = vsel %vm342, %v612, -inf
    %637 = vmax.xlane.f32.xlu0 %v636
    %v638 = vpop.xlane.xlu0 %637
    %v639 = vsub.f32 %v585, %v617
    %v640 = vsub.f32 %v588, %v620
    %v641 = vsub.f32 %v593, %v623
    %v642 = vsub.f32 %v596, %v626
    %v643 = vsub.f32 %v601, %v629
    %v644 = vsub.f32 %v604, %v632
    %v645 = vsub.f32 %v609, %v635
    %v646 = vsub.f32 %v612, %v638
    %v647 = vmul.f32 %v639, 1.442695
    %v648 = vpow.pop %v647
    %v649 = vmul.f32 %v640, 1.442695
    %v650 = vpow.pop %v649
    %v651 = vmul.f32 %v641, 1.442695
    %v652 = vpow.pop %v651
    %v653 = vmul.f32 %v642, 1.442695
    %v654 = vpow.pop %v653
    %v655 = vmul.f32 %v643, 1.442695
    %v656 = vpow.pop %v655
    %v657 = vmul.f32 %v644, 1.442695
    %v658 = vpow.pop %v657
    %v659 = vmul.f32 %v645, 1.442695
    %v660 = vpow.pop %v659
    %v661 = vmul.f32 %v646, 1.442695
    %v662 = vpow.pop %v661
    %v663 = vsel %vm342, %v648, 0.0
    %664 = vadd.xlane.f32.xlu0 %v663
    %v665 = vpop.xlane.xlu0 %664
    %v666 = vsel %vm342, %v650, 0.0
    %667 = vadd.xlane.f32.xlu0 %v666
    %v668 = vpop.xlane.xlu0 %667
    %v669 = vsel %vm342, %v652, 0.0
    %670 = vadd.xlane.f32.xlu0 %v669
    %v671 = vpop.xlane.xlu0 %670
    %v672 = vsel %vm342, %v654, 0.0
    %673 = vadd.xlane.f32.xlu0 %v672
    %v674 = vpop.xlane.xlu0 %673
    %v675 = vsel %vm342, %v656, 0.0
    %676 = vadd.xlane.f32.xlu0 %v675
    %v677 = vpop.xlane.xlu0 %676
    %v678 = vsel %vm342, %v658, 0.0
    %679 = vadd.xlane.f32.xlu0 %v678
    %v680 = vpop.xlane.xlu0 %679
    %v681 = vsel %vm342, %v660, 0.0
    %682 = vadd.xlane.f32.xlu0 %v681
    %v683 = vpop.xlane.xlu0 %682
    %v684 = vsel %vm342, %v662, 0.0
    %685 = vadd.xlane.f32.xlu0 %v684
    %v686 = vpop.xlane.xlu0 %685
    %v687 = vrcp.pop %v665
    %v688 = vrcp.pop %v668
    %v689 = vrcp.pop %v671
    %v690 = vrcp.pop %v674
    %v691 = vrcp.pop %v677
    %v692 = vrcp.pop %v680
    %v693 = vrcp.pop %v683
    %v694 = vrcp.pop %v686
    %v695 = vmul.f32 %v648, %v687
    %v696 = vmul.f32 %v650, %v688
    %v697 = vmul.f32 %v652, %v689
    %v698 = vmul.f32 %v654, %v690
    %v699 = vmul.f32 %v656, %v691
    %v700 = vmul.f32 %v658, %v692
    %v701 = vmul.f32 %v660, %v693
    %v702 = vmul.f32 %v662, %v694
    %v703 = vpack.c.bf16 %v696, %v695
    %v704 = vpack.c.bf16 %v698, %v697
    %v705 = vpack.c.bf16 %v700, %v699
    %v706 = vpack.c.bf16 %v702, %v701
    %709 = vrot.lane.b32.xlu0 %v243, 64
    %v710 = vpop.permute.xlu0 %709
    %711 = vrot.lane.b32.xlu0 %v244, 64
    %v712 = vpop.permute.xlu0 %711
    %v714 = vsel %vm342, %v710, 0
    %v717 = vsel %vm342, %v712, 0
    %v720 = vsel %vm342, %v703, 0
    %v723 = vsel %vm342, %v704, 0
    %v726 = vsel %vm342, %v705, 0
    %v729 = vsel %vm342, %v706, 0
    %731 = vmatprep.subr.bf16.mxu0 0
    %732 = vmatpush1.bf16.xpose.msra.mxu0 %v720
    %733 = vmatprep.subr.bf16.mxu0 0
    %734 = vmatpush1.bf16.xpose.msra.mxu0 %v723
    %735 = vmatprep.subr.bf16.mxu0 0
    %736 = vmatpush1.bf16.xpose.msra.mxu0 %v726
    %737 = vmatprep.subr.bf16.mxu0 0
    %738 = vmatpush1.bf16.xpose.msra.mxu0 %v729
    %739 = vmatprep.subr.bf16.mxu0 0
    %740 = vmatpush1.bf16.xpose.msra.mxu0 0
    %741 = vmatprep.subr.bf16.mxu0 0
    %742 = vmatpush1.bf16.xpose.msra.mxu0 0
    %743 = vmatprep.subr.bf16.mxu0 0
    %744 = vmatpush1.bf16.xpose.msra.mxu0 0
    %745 = vmatprep.subr.bf16.mxu0 0
    %746 = vmatpush1.bf16.xpose.msra.mxu0 0
    %747 = vmatprep.subr.bf16.mxu0 0
    %748 = vmatpush1.bf16.xpose.msra.mxu0 0
    %749 = vmatprep.subr.bf16.mxu0 0
    %750 = vmatpush1.bf16.xpose.msra.mxu0 0
    %751 = vmatprep.subr.bf16.mxu0 0
    %752 = vmatpush1.bf16.xpose.msra.mxu0 0
    %753 = vmatprep.subr.bf16.mxu0 0
    %754 = vmatpush1.bf16.xpose.msra.mxu0 0
    %755 = vmatprep.subr.bf16.mxu0 0
    %756 = vmatpush1.bf16.xpose.msra.mxu0 0
    %757 = vmatprep.subr.bf16.mxu0 0
    %758 = vmatpush1.bf16.xpose.msra.mxu0 0
    %759 = vmatprep.subr.bf16.mxu0 0
    %760 = vmatpush1.bf16.xpose.msra.mxu0 0
    %761 = vmatprep.subr.bf16.mxu0 0
    %762 = vmatpush1.bf16.xpose.msra.mxu0 0
    %763 = vmatprep.mubr.bf16.mxu0 0
    %764 = vmatmul.mubr.bf16.gmra.mrb[0].mxu0 %v714
    %v765 = vpop.f32.mrb[0].mxu0
    %v766 = vadd.f32 0.0, %v765
    %v767 = vpop.f32.mrb[0].mxu0
    %v768 = vpop.f32.mrb[0].mxu0
    %v769 = vadd.f32 0.0, %v768
    %v770 = vpop.f32.mrb[0].mxu0
    %771 = vmatprep.mubr.bf16.mxu0 0
    %772 = vmatmul.mubr.bf16.gmra.mrb[0].mxu0 %v717
    %v773 = vpop.f32.mrb[0].mxu0
    %v774 = vadd.f32 0.0, %v773
    %v775 = vpop.f32.mrb[0].mxu0
    %v776 = vpop.f32.mrb[0].mxu0
    %v777 = vadd.f32 0.0, %v776
    %v778 = vpop.f32.mrb[0].mxu0
    %779 = vdwg.mxu0
    %784 = vrot.lane.b32.xlu0 %v766, 64
    %v785 = vpop.permute.xlu0 %784
    %786 = vrot.lane.b32.xlu0 %v769, 64
    %v787 = vpop.permute.xlu0 %786
    %788 = vrot.lane.b32.xlu0 %v774, 64
    %v789 = vpop.permute.xlu0 %788
    %790 = vrot.lane.b32.xlu0 %v777, 64
    %v791 = vpop.permute.xlu0 %790
    %v796 = vsel %vm342, %v488, %v785
    %v797 = vsel %vm342, %v491, %v787
    %v798 = vsel %vm342, %v496, %v789
    %v799 = vsel %vm342, %v499, %v791
    %s800 = sld [smem:[#allocation2]]
    %v801 = vstv %s800
    %v802 = vmul.f32 %v801, %v796
    %v803 = vmul.f32 %v801, %v797
    %v804 = vmul.f32 %v801, %v798
    %v805 = vmul.f32 %v801, %v799
    %v806 = vld [vmem:[%s4] sm:$0xff]
    %v807 = vld [vmem:[%s4 + $0x8] sm:$0xff]
    %v808 = vld [vmem:[%s4 + $0x10] sm:$0xff]
    %v809 = vld [vmem:[%s4 + $0x18] sm:$0xff]
    %811 = vset.pattern.permute.xlu0 0
    %812 = vperm.xlu0 %811, %v806
    %v813 = vpop.permute.xlu0 %812
    %816 = vset.pattern.permute.xlu0 0
    %817 = vperm.xlu0 %816, %v807
    %v818 = vpop.permute.xlu0 %817
    %821 = vset.pattern.permute.xlu0 0
    %822 = vperm.xlu0 %821, %v808
    %v823 = vpop.permute.xlu0 %822
    %826 = vset.pattern.permute.xlu0 0
    %827 = vperm.xlu0 %826, %v809
    %v828 = vpop.permute.xlu0 %827
    %v830 = vadd.f32 %v802, %v813
    %v831 = vadd.f32 %v803, %v818
    %v832 = vadd.f32 %v804, %v823
    %v833 = vadd.f32 %v805, %v828
    %v834 = vadd.f32 %v830, %v52
    %v835 = vadd.f32 %v831, %v53
    %v836 = vadd.f32 %v832, %v54
    %v837 = vadd.f32 %v833, %v55
    %838 = vst [vmem:[#allocation8] sm:$0xff] %v834
    %839 = vst [vmem:[#allocation8 + $0x8] sm:$0xff] %v835
    %840 = vst [vmem:[#allocation8 + $0x10] sm:$0xff] %v836
    %841 = vst [vmem:[#allocation8 + $0x18] sm:$0xff] %v837
    // Predicated region
    $region34: #{tpu_custom_call.1} parent=1 // pred_check
      _
    $region35: #{tpu_custom_call.1} parent=1 // pred_check_branch
      %843 = sbr.rel (0) target = $region37
    $region36: #{tpu_custom_call.1} parent=1 // pred_region
      %s845 = ssub.s32 512, 512
      %846 = vsyncadd [#allocation5], %s845
      %s847 = sshll.u32 [#allocation8], 4
      %s848 = int_to_ptr.vmem [resolvable:$true] %s847
      %853 = dma.vmem_to_hbm [thread:$0]  %s848, 512, %s6, [#allocation5], 128, 128, 8
    $region37: #{tpu_custom_call.1} parent=1 // pred_fallthru
      _
    // Predicated region
    $region38: #{tpu_custom_call.1} parent=1 // pred_check
      _
    $region39: #{tpu_custom_call.1} parent=1 // pred_check_branch
      %855 = sbr.rel (0) target = $region41
    $region40: #{tpu_custom_call.1} parent=1 // pred_region
      %856 = dma.done [#allocation5], 512
    $region41: #{tpu_custom_call.1} parent=1 // pred_fallthru
      _
    %857 = vsyncpa [#allocation4], 1
    %858 = vsyncpa [#allocation7], 1
    %859 = vsyncpa [#allocation5], 1

</llo_original>
